<compile_context>
chip_gen: v6e
topology: v6e:2x2x1
jax: 0.10.0
libtpu: 0.0.40
codegen_flags: <defaults>
</compile_context>

<pallas_src>
import jax
import jax.numpy as jnp
from jax.experimental import pallas as pl
from jax.experimental.pallas import tpu as pltpu

# Offsets into the packed (44,) f32 parameter vector.
# Weights use PyTorch nn.Linear layout (out, in), row-major, then bias.
_OFF_W1, _OFF_B1 = 0, 8     # W1: (4,2), b1: (4,)
_OFF_W2, _OFF_B2 = 12, 20   # W2: (2,4), b2: (2,)
_OFF_W3, _OFF_B3 = 22, 30   # W3: (4,2), b3: (4,)
_OFF_W4, _OFF_B4 = 34, 42   # W4: (2,4), b4: (2,)
_N_PARAMS = 44

_SUBLANES = 8        # batch sublanes packed per feature row-group
_LANE = 128          # lane granularity
_BLOCK_LANES = 2048  # max lanes per grid step (16K samples per step)
_CHUNK_LANES = 512   # per-op lane width inside a block (bounds vreg pressure)


def _make_kernel(blk):
    """Kernel for one (16, blk) block; iterates static 512-lane chunks."""
    chunk = min(_CHUNK_LANES, blk)
    spans = [(o, min(chunk, blk - o)) for o in range(0, blk, chunk)]

    def kernel(p_ref, x_ref, o_ref):
        # p_ref: (44,) f32 in SMEM (scalar prefetch).
        # x_ref / o_ref: (16, blk) f32 in VMEM; rows 0..7 = feature 0,
        # rows 8..15 = feature 1, lanes (+sublanes) = batch.
        p = [p_ref[k] for k in range(_N_PARAMS)]   # read each SMEM scalar once

        def linear(rows, w_off, b_off, n_out, n_in):
            outs = []
            for j in range(n_out):
                s = rows[0] * p[w_off + j * n_in]
                for i in range(1, n_in):
                    s = s + rows[i] * p[w_off + j * n_in + i]
                outs.append(s + p[b_off + j])
            return outs

        def relu(rows):
            return [jnp.maximum(r, 0.0) for r in rows]

        def sigmoid(r):
            # EUP tanh form of sigmoid: avoids the divide's VALU Newton steps.
            return 0.5 * jnp.tanh(0.5 * r) + 0.5

        for off, cw in spans:  # static chunk offsets (multiples of 128 lanes)
            xs = [x_ref[pl.ds(0, 8), pl.ds(off, cw)],
                  x_ref[pl.ds(8, 8), pl.ds(off, cw)]]          # 2 x (8, cw)
            h = relu(linear(xs, _OFF_W1, _OFF_B1, 4, 2))       # encoder
            h = relu(linear(h, _OFF_W2, _OFF_B2, 2, 4))
            h = relu(linear(h, _OFF_W3, _OFF_B3, 4, 2))        # decoder
            h = linear(h, _OFF_W4, _OFF_B4, 2, 4)
            o_ref[pl.ds(0, 8), pl.ds(off, cw)] = sigmoid(h[0])
            o_ref[pl.ds(8, 8), pl.ds(off, cw)] = sigmoid(h[1])

    return kernel


def _round_up(x, m):
    return ((x + m - 1) // m) * m


def _tiling(n):
    """Lane count (padded) and lane-block size for batch n."""
    lanes = _round_up(max(1, -(-n // _SUBLANES)), _LANE)   # lanes, multiple of 128
    blk = min(_BLOCK_LANES, lanes)
    if lanes >= 2 * _LANE:   # give v7x's two TensorCores >= 2 grid steps
        blk = min(blk, max(_LANE, (lanes // 2) // _LANE * _LANE))
    l_total = _round_up(lanes, blk)                        # pad to block multiple
    return l_total, blk


def pack_params(params):
    """Pack PyTorch-layout weights/biases into one flat (44,) f32 vector (once)."""
    parts = []
    for li in (1, 2, 3, 4):
        parts.append(jnp.asarray(params[f"w{li}"], jnp.float32).reshape(-1))
        parts.append(jnp.asarray(params[f"b{li}"], jnp.float32).reshape(-1))
    packed = jnp.concatenate(parts)
    assert packed.shape == (_N_PARAMS,)
    return packed


@jax.jit
def autoencoder_forward(x, packed_params):
    """x: (N, 2) float32.  packed_params: (44,) f32 from pack_params()."""
    N, F = x.shape
    assert F == 2, "Autoencoder input feature dim must be 2"
    l_total, blk = _tiling(N)
    NP = _SUBLANES * l_total
    grid = (l_total // blk,)

    # Fused pad(+tail only)+transpose+reshape under jit: sample n, feature f
    # lands at row f*8 + n // l_total, lane n % l_total.
    xp = jnp.pad(x.astype(jnp.float32), ((0, NP - N), (0, 0)))   # (NP, 2)
    xt = xp.T.reshape(16, l_total)                               # (16, L_total)

    out = pl.pallas_call(
        _make_kernel(blk),
        out_shape=jax.ShapeDtypeStruct((16, l_total), jnp.float32),
        grid_spec=pltpu.PrefetchScalarGridSpec(
            num_scalar_prefetch=1,                               # params -> SMEM
            grid=grid,
            in_specs=[pl.BlockSpec((16, blk), lambda i, p: (0, i))],
            out_specs=pl.BlockSpec((16, blk), lambda i, p: (0, i)),
        ),
        compiler_params=pltpu.CompilerParams(
            dimension_semantics=("parallel",)),                  # 2-TC shard on v7x
    )(packed_params, xt)

    # Inverse repack (fused under jit); padded tail holds finite garbage
    # (sigmoid of biases) and is dropped here.
    return out.reshape(2, NP).T[:N]


def init_params(key):
    """Deterministic init with PyTorch nn.Linear shapes: w (out,in), b (out,)."""
    dims = [(4, 2), (2, 4), (4, 2), (2, 4)]  # (out, in) for the 4 Linear layers
    params = {}
    for idx, (o, i) in enumerate(dims, start=1):
        key, kw, kb = jax.random.split(key, 3)
        bound = 1.0 / jnp.sqrt(i)
        params[f"w{idx}"] = jax.random.uniform(kw, (o, i), jnp.float32, -bound, bound)
        params[f"b{idx}"] = jax.random.uniform(kb, (o,), jnp.float32, -bound, bound)
    return params


def reference_forward(x, params):
    hp = jax.lax.Precision.HIGHEST   # keep the reference matmuls in true f32
    h = jnp.maximum(jnp.dot(x, params["w1"].T, precision=hp) + params["b1"], 0.0)
    h = jnp.maximum(jnp.dot(h, params["w2"].T, precision=hp) + params["b2"], 0.0)
    h = jnp.maximum(jnp.dot(h, params["w3"].T, precision=hp) + params["b3"], 0.0)
    return jax.nn.sigmoid(jnp.dot(h, params["w4"].T, precision=hp) + params["b4"])


if __name__ == "__main__":
    key = jax.random.PRNGKey(0)
    key, kx1, kx2, kx3 = jax.random.split(key, 4)

    params = init_params(key)
    packed = pack_params(params)   # packed once, reused across calls

    # (batch sizes): tiny, ragged single-step, and multi-step / multi-chunk grid.
    for kx, n in ((kx1, 8), (kx2, 300), (kx3, 12000)):
        x = jax.random.normal(kx, (n, 2), jnp.float32)
        y = jax.block_until_ready(autoencoder_forward(x, packed))
        y_ref = reference_forward(x, params)
        assert y.shape == (n, 2)
        assert jnp.allclose(y, y_ref, atol=5e-5, rtol=5e-5), \
            f"mismatch vs reference at batch={n}"

    print("KERNEL_OK")
</pallas_src>

<mosaic_0001>
module attributes {stable_mosaic.version = 11 : i64} {
  func.func @kernel(%arg0: i32, %arg1: memref<44xf32, #tpu.memory_space<smem>>, %arg2: memref<16x128xf32, #tpu.memory_space<vmem>>, %arg3: memref<16x128xf32, #tpu.memory_space<vmem>>) attributes {dimension_semantics = [#tpu.dimension_semantics<parallel>], iteration_bounds = array<i64: 1>, scalar_prefetch = 1 : i64, scratch_operands = 0 : i64, tpu.core_type = #tpu.core_type<tc>, window_params = [{transform_indices = @transform_0, window_bounds = array<i64: 16, 128>}, {transform_indices = @transform_1, window_bounds = array<i64: 16, 128>}]} {
    %c0 = arith.constant 0 : index
    %0 = memref.load %arg1[%c0] : memref<44xf32, #tpu.memory_space<smem>>
    %c1 = arith.constant 1 : index
    %1 = memref.load %arg1[%c1] : memref<44xf32, #tpu.memory_space<smem>>
    %c2 = arith.constant 2 : index
    %2 = memref.load %arg1[%c2] : memref<44xf32, #tpu.memory_space<smem>>
    %c3 = arith.constant 3 : index
    %3 = memref.load %arg1[%c3] : memref<44xf32, #tpu.memory_space<smem>>
    %c4 = arith.constant 4 : index
    %4 = memref.load %arg1[%c4] : memref<44xf32, #tpu.memory_space<smem>>
    %c5 = arith.constant 5 : index
    %5 = memref.load %arg1[%c5] : memref<44xf32, #tpu.memory_space<smem>>
    %c6 = arith.constant 6 : index
    %6 = memref.load %arg1[%c6] : memref<44xf32, #tpu.memory_space<smem>>
    %c7 = arith.constant 7 : index
    %7 = memref.load %arg1[%c7] : memref<44xf32, #tpu.memory_space<smem>>
    %c8 = arith.constant 8 : index
    %8 = memref.load %arg1[%c8] : memref<44xf32, #tpu.memory_space<smem>>
    %c9 = arith.constant 9 : index
    %9 = memref.load %arg1[%c9] : memref<44xf32, #tpu.memory_space<smem>>
    %c10 = arith.constant 10 : index
    %10 = memref.load %arg1[%c10] : memref<44xf32, #tpu.memory_space<smem>>
    %c11 = arith.constant 11 : index
    %11 = memref.load %arg1[%c11] : memref<44xf32, #tpu.memory_space<smem>>
    %c12 = arith.constant 12 : index
    %12 = memref.load %arg1[%c12] : memref<44xf32, #tpu.memory_space<smem>>
    %c13 = arith.constant 13 : index
    %13 = memref.load %arg1[%c13] : memref<44xf32, #tpu.memory_space<smem>>
    %c14 = arith.constant 14 : index
    %14 = memref.load %arg1[%c14] : memref<44xf32, #tpu.memory_space<smem>>
    %c15 = arith.constant 15 : index
    %15 = memref.load %arg1[%c15] : memref<44xf32, #tpu.memory_space<smem>>
    %c16 = arith.constant 16 : index
    %16 = memref.load %arg1[%c16] : memref<44xf32, #tpu.memory_space<smem>>
    %c17 = arith.constant 17 : index
    %17 = memref.load %arg1[%c17] : memref<44xf32, #tpu.memory_space<smem>>
    %c18 = arith.constant 18 : index
    %18 = memref.load %arg1[%c18] : memref<44xf32, #tpu.memory_space<smem>>
    %c19 = arith.constant 19 : index
    %19 = memref.load %arg1[%c19] : memref<44xf32, #tpu.memory_space<smem>>
    %c20 = arith.constant 20 : index
    %20 = memref.load %arg1[%c20] : memref<44xf32, #tpu.memory_space<smem>>
    %c21 = arith.constant 21 : index
    %21 = memref.load %arg1[%c21] : memref<44xf32, #tpu.memory_space<smem>>
    %c22 = arith.constant 22 : index
    %22 = memref.load %arg1[%c22] : memref<44xf32, #tpu.memory_space<smem>>
    %c23 = arith.constant 23 : index
    %23 = memref.load %arg1[%c23] : memref<44xf32, #tpu.memory_space<smem>>
    %c24 = arith.constant 24 : index
    %24 = memref.load %arg1[%c24] : memref<44xf32, #tpu.memory_space<smem>>
    %c25 = arith.constant 25 : index
    %25 = memref.load %arg1[%c25] : memref<44xf32, #tpu.memory_space<smem>>
    %c26 = arith.constant 26 : index
    %26 = memref.load %arg1[%c26] : memref<44xf32, #tpu.memory_space<smem>>
    %c27 = arith.constant 27 : index
    %27 = memref.load %arg1[%c27] : memref<44xf32, #tpu.memory_space<smem>>
    %c28 = arith.constant 28 : index
    %28 = memref.load %arg1[%c28] : memref<44xf32, #tpu.memory_space<smem>>
    %c29 = arith.constant 29 : index
    %29 = memref.load %arg1[%c29] : memref<44xf32, #tpu.memory_space<smem>>
    %c30 = arith.constant 30 : index
    %30 = memref.load %arg1[%c30] : memref<44xf32, #tpu.memory_space<smem>>
    %c31 = arith.constant 31 : index
    %31 = memref.load %arg1[%c31] : memref<44xf32, #tpu.memory_space<smem>>
    %c32 = arith.constant 32 : index
    %32 = memref.load %arg1[%c32] : memref<44xf32, #tpu.memory_space<smem>>
    %c33 = arith.constant 33 : index
    %33 = memref.load %arg1[%c33] : memref<44xf32, #tpu.memory_space<smem>>
    %c34 = arith.constant 34 : index
    %34 = memref.load %arg1[%c34] : memref<44xf32, #tpu.memory_space<smem>>
    %c35 = arith.constant 35 : index
    %35 = memref.load %arg1[%c35] : memref<44xf32, #tpu.memory_space<smem>>
    %c36 = arith.constant 36 : index
    %36 = memref.load %arg1[%c36] : memref<44xf32, #tpu.memory_space<smem>>
    %c37 = arith.constant 37 : index
    %37 = memref.load %arg1[%c37] : memref<44xf32, #tpu.memory_space<smem>>
    %c38 = arith.constant 38 : index
    %38 = memref.load %arg1[%c38] : memref<44xf32, #tpu.memory_space<smem>>
    %c39 = arith.constant 39 : index
    %39 = memref.load %arg1[%c39] : memref<44xf32, #tpu.memory_space<smem>>
    %c40 = arith.constant 40 : index
    %40 = memref.load %arg1[%c40] : memref<44xf32, #tpu.memory_space<smem>>
    %c41 = arith.constant 41 : index
    %41 = memref.load %arg1[%c41] : memref<44xf32, #tpu.memory_space<smem>>
    %c42 = arith.constant 42 : index
    %42 = memref.load %arg1[%c42] : memref<44xf32, #tpu.memory_space<smem>>
    %c43 = arith.constant 43 : index
    %43 = memref.load %arg1[%c43] : memref<44xf32, #tpu.memory_space<smem>>
    %c0_0 = arith.constant 0 : index
    %c0_1 = arith.constant 0 : index
    %44 = vector.load %arg2[%c0_0, %c0_1] : memref<16x128xf32, #tpu.memory_space<vmem>>, vector<8x128xf32>
    %c8_2 = arith.constant 8 : index
    %c0_3 = arith.constant 0 : index
    %45 = vector.load %arg2[%c8_2, %c0_3] : memref<16x128xf32, #tpu.memory_space<vmem>>, vector<8x128xf32>
    %46 = vector.broadcast %0 : f32 to vector<8x128xf32>
    %47 = arith.mulf %44, %46 : vector<8x128xf32>
    %48 = vector.broadcast %1 : f32 to vector<8x128xf32>
    %49 = arith.mulf %45, %48 : vector<8x128xf32>
    %50 = arith.addf %47, %49 : vector<8x128xf32>
    %51 = vector.broadcast %8 : f32 to vector<8x128xf32>
    %52 = arith.addf %50, %51 : vector<8x128xf32>
    %53 = vector.broadcast %2 : f32 to vector<8x128xf32>
    %54 = arith.mulf %44, %53 : vector<8x128xf32>
    %55 = vector.broadcast %3 : f32 to vector<8x128xf32>
    %56 = arith.mulf %45, %55 : vector<8x128xf32>
    %57 = arith.addf %54, %56 : vector<8x128xf32>
    %58 = vector.broadcast %9 : f32 to vector<8x128xf32>
    %59 = arith.addf %57, %58 : vector<8x128xf32>
    %60 = vector.broadcast %4 : f32 to vector<8x128xf32>
    %61 = arith.mulf %44, %60 : vector<8x128xf32>
    %62 = vector.broadcast %5 : f32 to vector<8x128xf32>
    %63 = arith.mulf %45, %62 : vector<8x128xf32>
    %64 = arith.addf %61, %63 : vector<8x128xf32>
    %65 = vector.broadcast %10 : f32 to vector<8x128xf32>
    %66 = arith.addf %64, %65 : vector<8x128xf32>
    %67 = vector.broadcast %6 : f32 to vector<8x128xf32>
    %68 = arith.mulf %44, %67 : vector<8x128xf32>
    %69 = vector.broadcast %7 : f32 to vector<8x128xf32>
    %70 = arith.mulf %45, %69 : vector<8x128xf32>
    %71 = arith.addf %68, %70 : vector<8x128xf32>
    %72 = vector.broadcast %11 : f32 to vector<8x128xf32>
    %73 = arith.addf %71, %72 : vector<8x128xf32>
    %cst = arith.constant 0.000000e+00 : f32
    %74 = vector.broadcast %cst : f32 to vector<8x128xf32>
    %75 = arith.maximumf %52, %74 : vector<8x128xf32>
    %cst_4 = arith.constant 0.000000e+00 : f32
    %76 = vector.broadcast %cst_4 : f32 to vector<8x128xf32>
    %77 = arith.maximumf %59, %76 : vector<8x128xf32>
    %cst_5 = arith.constant 0.000000e+00 : f32
    %78 = vector.broadcast %cst_5 : f32 to vector<8x128xf32>
    %79 = arith.maximumf %66, %78 : vector<8x128xf32>
    %cst_6 = arith.constant 0.000000e+00 : f32
    %80 = vector.broadcast %cst_6 : f32 to vector<8x128xf32>
    %81 = arith.maximumf %73, %80 : vector<8x128xf32>
    %82 = vector.broadcast %12 : f32 to vector<8x128xf32>
    %83 = arith.mulf %75, %82 : vector<8x128xf32>
    %84 = vector.broadcast %13 : f32 to vector<8x128xf32>
    %85 = arith.mulf %77, %84 : vector<8x128xf32>
    %86 = arith.addf %83, %85 : vector<8x128xf32>
    %87 = vector.broadcast %14 : f32 to vector<8x128xf32>
    %88 = arith.mulf %79, %87 : vector<8x128xf32>
    %89 = arith.addf %86, %88 : vector<8x128xf32>
    %90 = vector.broadcast %15 : f32 to vector<8x128xf32>
    %91 = arith.mulf %81, %90 : vector<8x128xf32>
    %92 = arith.addf %89, %91 : vector<8x128xf32>
    %93 = vector.broadcast %20 : f32 to vector<8x128xf32>
    %94 = arith.addf %92, %93 : vector<8x128xf32>
    %95 = vector.broadcast %16 : f32 to vector<8x128xf32>
    %96 = arith.mulf %75, %95 : vector<8x128xf32>
    %97 = vector.broadcast %17 : f32 to vector<8x128xf32>
    %98 = arith.mulf %77, %97 : vector<8x128xf32>
    %99 = arith.addf %96, %98 : vector<8x128xf32>
    %100 = vector.broadcast %18 : f32 to vector<8x128xf32>
    %101 = arith.mulf %79, %100 : vector<8x128xf32>
    %102 = arith.addf %99, %101 : vector<8x128xf32>
    %103 = vector.broadcast %19 : f32 to vector<8x128xf32>
    %104 = arith.mulf %81, %103 : vector<8x128xf32>
    %105 = arith.addf %102, %104 : vector<8x128xf32>
    %106 = vector.broadcast %21 : f32 to vector<8x128xf32>
    %107 = arith.addf %105, %106 : vector<8x128xf32>
    %cst_7 = arith.constant 0.000000e+00 : f32
    %108 = vector.broadcast %cst_7 : f32 to vector<8x128xf32>
    %109 = arith.maximumf %94, %108 : vector<8x128xf32>
    %cst_8 = arith.constant 0.000000e+00 : f32
    %110 = vector.broadcast %cst_8 : f32 to vector<8x128xf32>
    %111 = arith.maximumf %107, %110 : vector<8x128xf32>
    %112 = vector.broadcast %22 : f32 to vector<8x128xf32>
    %113 = arith.mulf %109, %112 : vector<8x128xf32>
    %114 = vector.broadcast %23 : f32 to vector<8x128xf32>
    %115 = arith.mulf %111, %114 : vector<8x128xf32>
    %116 = arith.addf %113, %115 : vector<8x128xf32>
    %117 = vector.broadcast %30 : f32 to vector<8x128xf32>
    %118 = arith.addf %116, %117 : vector<8x128xf32>
    %119 = vector.broadcast %24 : f32 to vector<8x128xf32>
    %120 = arith.mulf %109, %119 : vector<8x128xf32>
    %121 = vector.broadcast %25 : f32 to vector<8x128xf32>
    %122 = arith.mulf %111, %121 : vector<8x128xf32>
    %123 = arith.addf %120, %122 : vector<8x128xf32>
    %124 = vector.broadcast %31 : f32 to vector<8x128xf32>
    %125 = arith.addf %123, %124 : vector<8x128xf32>
    %126 = vector.broadcast %26 : f32 to vector<8x128xf32>
    %127 = arith.mulf %109, %126 : vector<8x128xf32>
    %128 = vector.broadcast %27 : f32 to vector<8x128xf32>
    %129 = arith.mulf %111, %128 : vector<8x128xf32>
    %130 = arith.addf %127, %129 : vector<8x128xf32>
    %131 = vector.broadcast %32 : f32 to vector<8x128xf32>
    %132 = arith.addf %130, %131 : vector<8x128xf32>
    %133 = vector.broadcast %28 : f32 to vector<8x128xf32>
    %134 = arith.mulf %109, %133 : vector<8x128xf32>
    %135 = vector.broadcast %29 : f32 to vector<8x128xf32>
    %136 = arith.mulf %111, %135 : vector<8x128xf32>
    %137 = arith.addf %134, %136 : vector<8x128xf32>
    %138 = vector.broadcast %33 : f32 to vector<8x128xf32>
    %139 = arith.addf %137, %138 : vector<8x128xf32>
    %cst_9 = arith.constant 0.000000e+00 : f32
    %140 = vector.broadcast %cst_9 : f32 to vector<8x128xf32>
    %141 = arith.maximumf %118, %140 : vector<8x128xf32>
    %cst_10 = arith.constant 0.000000e+00 : f32
    %142 = vector.broadcast %cst_10 : f32 to vector<8x128xf32>
    %143 = arith.maximumf %125, %142 : vector<8x128xf32>
    %cst_11 = arith.constant 0.000000e+00 : f32
    %144 = vector.broadcast %cst_11 : f32 to vector<8x128xf32>
    %145 = arith.maximumf %132, %144 : vector<8x128xf32>
    %cst_12 = arith.constant 0.000000e+00 : f32
    %146 = vector.broadcast %cst_12 : f32 to vector<8x128xf32>
    %147 = arith.maximumf %139, %146 : vector<8x128xf32>
    %148 = vector.broadcast %34 : f32 to vector<8x128xf32>
    %149 = arith.mulf %141, %148 : vector<8x128xf32>
    %150 = vector.broadcast %35 : f32 to vector<8x128xf32>
    %151 = arith.mulf %143, %150 : vector<8x128xf32>
    %152 = arith.addf %149, %151 : vector<8x128xf32>
    %153 = vector.broadcast %36 : f32 to vector<8x128xf32>
    %154 = arith.mulf %145, %153 : vector<8x128xf32>
    %155 = arith.addf %152, %154 : vector<8x128xf32>
    %156 = vector.broadcast %37 : f32 to vector<8x128xf32>
    %157 = arith.mulf %147, %156 : vector<8x128xf32>
    %158 = arith.addf %155, %157 : vector<8x128xf32>
    %159 = vector.broadcast %42 : f32 to vector<8x128xf32>
    %160 = arith.addf %158, %159 : vector<8x128xf32>
    %161 = vector.broadcast %38 : f32 to vector<8x128xf32>
    %162 = arith.mulf %141, %161 : vector<8x128xf32>
    %163 = vector.broadcast %39 : f32 to vector<8x128xf32>
    %164 = arith.mulf %143, %163 : vector<8x128xf32>
    %165 = arith.addf %162, %164 : vector<8x128xf32>
    %166 = vector.broadcast %40 : f32 to vector<8x128xf32>
    %167 = arith.mulf %145, %166 : vector<8x128xf32>
    %168 = arith.addf %165, %167 : vector<8x128xf32>
    %169 = vector.broadcast %41 : f32 to vector<8x128xf32>
    %170 = arith.mulf %147, %169 : vector<8x128xf32>
    %171 = arith.addf %168, %170 : vector<8x128xf32>
    %172 = vector.broadcast %43 : f32 to vector<8x128xf32>
    %173 = arith.addf %171, %172 : vector<8x128xf32>
    %cst_13 = arith.constant 5.000000e-01 : f32
    %174 = vector.broadcast %cst_13 : f32 to vector<8x128xf32>
    %175 = arith.mulf %174, %160 : vector<8x128xf32>
    %176 = math.tanh %175 : vector<8x128xf32>
    %cst_14 = arith.constant 5.000000e-01 : f32
    %177 = vector.broadcast %cst_14 : f32 to vector<8x128xf32>
    %178 = arith.mulf %177, %176 : vector<8x128xf32>
    %cst_15 = arith.constant 5.000000e-01 : f32
    %179 = vector.broadcast %cst_15 : f32 to vector<8x128xf32>
    %180 = arith.addf %178, %179 : vector<8x128xf32>
    %c0_16 = arith.constant 0 : index
    %c0_17 = arith.constant 0 : index
    %181 = vector.load %arg3[%c0_16, %c0_17] : memref<16x128xf32, #tpu.memory_space<vmem>>, vector<8x128xf32>
    tpu.vector_store %arg3[%c0_16, %c0_17], %180 {strides = array<i32>} : memref<16x128xf32, #tpu.memory_space<vmem>>, vector<8x128xf32>,
    %cst_18 = arith.constant 5.000000e-01 : f32
    %182 = vector.broadcast %cst_18 : f32 to vector<8x128xf32>
    %183 = arith.mulf %182, %173 : vector<8x128xf32>
    %184 = math.tanh %183 : vector<8x128xf32>
    %cst_19 = arith.constant 5.000000e-01 : f32
    %185 = vector.broadcast %cst_19 : f32 to vector<8x128xf32>
    %186 = arith.mulf %185, %184 : vector<8x128xf32>
    %cst_20 = arith.constant 5.000000e-01 : f32
    %187 = vector.broadcast %cst_20 : f32 to vector<8x128xf32>
    %188 = arith.addf %186, %187 : vector<8x128xf32>
    %c8_21 = arith.constant 8 : index
    %c0_22 = arith.constant 0 : index
    %189 = vector.load %arg3[%c8_21, %c0_22] : memref<16x128xf32, #tpu.memory_space<vmem>>, vector<8x128xf32>
    tpu.vector_store %arg3[%c8_21, %c0_22], %188 {strides = array<i32>} : memref<16x128xf32, #tpu.memory_space<vmem>>, vector<8x128xf32>,
    return
  }
  func.func @transform_0(%arg0: i32, %arg1: memref<44xf32, #tpu.memory_space<smem>>) -> (i32, i32) {
    %c0_i32 = arith.constant 0 : i32
    %c0_i32_0 = arith.constant 0 : i32
    return %c0_i32, %arg0 : i32, i32
  }
  func.func @transform_1(%arg0: i32, %arg1: memref<44xf32, #tpu.memory_space<smem>>) -> (i32, i32) {
    %c0_i32 = arith.constant 0 : i32
    %c0_i32_0 = arith.constant 0 : i32
    return %c0_i32, %arg0 : i32, i32
  }
}

</mosaic_0001>

<llo_original>
// kernel: autoencoder_forward.1
$region0: #{autoencoder_forward.1}
  #allocation0 [shape = 'u32[]', space=smem, size = 0x4, offset = 0x4, fixed_abs, tag = 'smem constant byte address 0x4 - core index']
  #allocation1 [shape = 'u32[144,128]{1,0:T(1,128)}', space=vmem, size = 0x12000, scoped, tag = 'internal scratch']
  #allocation2 [shape = 's32[1]{0}', space=sflag, size = 0x4, scoped, tag = 'scoped memory for autoencoder_forward.1']
  #allocation3 [shape = 'u8[512]{0}', space=smem, size = 0x200, scoped, tag = 'prefetched SMEM operand 0']
  %s0 = inlined_call_operand.vmem [shape: f32[44], index: 0, kind: input, shape index: {}]
  %s1 = inlined_call_operand.vmem [shape: f32[16,128], index: 1, kind: input, shape index: {}]
  %s2 = inlined_call_operand.vmem [shape: f32[16,128], index: 2, kind: output, shape index: {}]
  %s3 = sld [smem:[#allocation0]]
  $region14: #{autoencoder_forward.1} parent=0
    _
  %s5 = ssub.s32 1, %s3
  %s6 = scalar_select 0, %s5, %s3
  %s7 = sshll.u32 %s0, 4
  %s8 = int_to_ptr.vmem [resolvable:$true] %s7
  %10 = dma.vmem_to_smem %s8, 16, [#allocation3], [#allocation2]
  %11 = dma.done [#allocation2], 16
  %12 = sfence
  // Predicated region
  $region2: #{autoencoder_forward.1} parent=0 // pred_check
    _
  $region3: #{autoencoder_forward.1} parent=0 // pred_check_branch
    %14 = sbr.rel (0) target = $region5
  $region4: #{autoencoder_forward.1} parent=0 // pred_region
    _
  $region5: #{autoencoder_forward.1} parent=0 // pred_fallthru
    _
  %s15 = sld [smem:[#allocation3]]
  %s16 = sld [smem:[#allocation3 + $0x1]]
  %s17 = sld [smem:[#allocation3 + $0x2]]
  %s18 = sld [smem:[#allocation3 + $0x3]]
  %s19 = sld [smem:[#allocation3 + $0x4]]
  %s20 = sld [smem:[#allocation3 + $0x5]]
  %s21 = sld [smem:[#allocation3 + $0x6]]
  %s22 = sld [smem:[#allocation3 + $0x7]]
  %s23 = sld [smem:[#allocation3 + $0x8]]
  %s24 = sld [smem:[#allocation3 + $0x9]]
  %s25 = sld [smem:[#allocation3 + $0xa]]
  %s26 = sld [smem:[#allocation3 + $0xb]]
  %s27 = sld [smem:[#allocation3 + $0xc]]
  %s28 = sld [smem:[#allocation3 + $0xd]]
  %s29 = sld [smem:[#allocation3 + $0xe]]
  %s30 = sld [smem:[#allocation3 + $0xf]]
  %s31 = sld [smem:[#allocation3 + $0x10]]
  %s32 = sld [smem:[#allocation3 + $0x11]]
  %s33 = sld [smem:[#allocation3 + $0x12]]
  %s34 = sld [smem:[#allocation3 + $0x13]]
  %s35 = sld [smem:[#allocation3 + $0x14]]
  %s36 = sld [smem:[#allocation3 + $0x15]]
  %s37 = sld [smem:[#allocation3 + $0x16]]
  %s38 = sld [smem:[#allocation3 + $0x17]]
  %s39 = sld [smem:[#allocation3 + $0x18]]
  %s40 = sld [smem:[#allocation3 + $0x19]]
  %s41 = sld [smem:[#allocation3 + $0x1a]]
  %s42 = sld [smem:[#allocation3 + $0x1b]]
  %s43 = sld [smem:[#allocation3 + $0x1c]]
  %s44 = sld [smem:[#allocation3 + $0x1d]]
  %s45 = sld [smem:[#allocation3 + $0x1e]]
  %s46 = sld [smem:[#allocation3 + $0x1f]]
  %s47 = sld [smem:[#allocation3 + $0x20]]
  %s48 = sld [smem:[#allocation3 + $0x21]]
  %s49 = sld [smem:[#allocation3 + $0x22]]
  %s50 = sld [smem:[#allocation3 + $0x23]]
  %s51 = sld [smem:[#allocation3 + $0x24]]
  %s52 = sld [smem:[#allocation3 + $0x25]]
  %s53 = sld [smem:[#allocation3 + $0x26]]
  %s54 = sld [smem:[#allocation3 + $0x27]]
  %s55 = sld [smem:[#allocation3 + $0x28]]
  %s56 = sld [smem:[#allocation3 + $0x29]]
  %s57 = sld [smem:[#allocation3 + $0x2a]]
  %s58 = sld [smem:[#allocation3 + $0x2b]]
  %v59 = vld [vmem:[%s1] sm:$0xff]
  %v60 = vld [vmem:[%s1 + $0x8] sm:$0xff]
  %v61 = vstv %s15
  %v62 = vmul.f32 %v59, %v61
  %v63 = vstv %s16
  %v64 = vmul.f32 %v60, %v63
  %v65 = vadd.f32 %v62, %v64
  %v66 = vstv %s23
  %v67 = vadd.f32 %v65, %v66
  %v68 = vstv %s17
  %v69 = vmul.f32 %v59, %v68
  %v70 = vstv %s18
  %v71 = vmul.f32 %v60, %v70
  %v72 = vadd.f32 %v69, %v71
  %v73 = vstv %s24
  %v74 = vadd.f32 %v72, %v73
  %v75 = vstv %s19
  %v76 = vmul.f32 %v59, %v75
  %v77 = vstv %s20
  %v78 = vmul.f32 %v60, %v77
  %v79 = vadd.f32 %v76, %v78
  %v80 = vstv %s25
  %v81 = vadd.f32 %v79, %v80
  %v82 = vstv %s21
  %v83 = vmul.f32 %v59, %v82
  %v84 = vstv %s22
  %v85 = vmul.f32 %v60, %v84
  %v86 = vadd.f32 %v83, %v85
  %v87 = vstv %s26
  %v88 = vadd.f32 %v86, %v87
  %v89 = vmax.f32 %v67, 0.0
  %v90 = vmax.f32 %v74, 0.0
  %v91 = vmax.f32 %v81, 0.0
  %v92 = vmax.f32 %v88, 0.0
  %v93 = vstv %s27
  %v94 = vmul.f32 %v89, %v93
  %v95 = vstv %s28
  %v96 = vmul.f32 %v90, %v95
  %v97 = vadd.f32 %v94, %v96
  %v98 = vstv %s29
  %v99 = vmul.f32 %v91, %v98
  %v100 = vadd.f32 %v97, %v99
  %v101 = vstv %s30
  %v102 = vmul.f32 %v92, %v101
  %v103 = vadd.f32 %v100, %v102
  %v104 = vstv %s35
  %v105 = vadd.f32 %v103, %v104
  %v106 = vstv %s31
  %v107 = vmul.f32 %v89, %v106
  %v108 = vstv %s32
  %v109 = vmul.f32 %v90, %v108
  %v110 = vadd.f32 %v107, %v109
  %v111 = vstv %s33
  %v112 = vmul.f32 %v91, %v111
  %v113 = vadd.f32 %v110, %v112
  %v114 = vstv %s34
  %v115 = vmul.f32 %v92, %v114
  %v116 = vadd.f32 %v113, %v115
  %v117 = vstv %s36
  %v118 = vadd.f32 %v116, %v117
  %v119 = vmax.f32 %v105, 0.0
  %v120 = vmax.f32 %v118, 0.0
  %v121 = vstv %s37
  %v122 = vmul.f32 %v119, %v121
  %v123 = vstv %s38
  %v124 = vmul.f32 %v120, %v123
  %v125 = vadd.f32 %v122, %v124
  %v126 = vstv %s45
  %v127 = vadd.f32 %v125, %v126
  %v128 = vstv %s39
  %v129 = vmul.f32 %v119, %v128
  %v130 = vstv %s40
  %v131 = vmul.f32 %v120, %v130
  %v132 = vadd.f32 %v129, %v131
  %v133 = vstv %s46
  %v134 = vadd.f32 %v132, %v133
  %v135 = vstv %s41
  %v136 = vmul.f32 %v119, %v135
  %v137 = vstv %s42
  %v138 = vmul.f32 %v120, %v137
  %v139 = vadd.f32 %v136, %v138
  %v140 = vstv %s47
  %v141 = vadd.f32 %v139, %v140
  %v142 = vstv %s43
  %v143 = vmul.f32 %v119, %v142
  %v144 = vstv %s44
  %v145 = vmul.f32 %v120, %v144
  %v146 = vadd.f32 %v143, %v145
  %v147 = vstv %s48
  %v148 = vadd.f32 %v146, %v147
  %v149 = vmax.f32 %v127, 0.0
  %v150 = vmax.f32 %v134, 0.0
  %v151 = vmax.f32 %v141, 0.0
  %v152 = vmax.f32 %v148, 0.0
  %v153 = vstv %s49
  %v154 = vmul.f32 %v149, %v153
  %v155 = vstv %s50
  %v156 = vmul.f32 %v150, %v155
  %v157 = vadd.f32 %v154, %v156
  %v158 = vstv %s51
  %v159 = vmul.f32 %v151, %v158
  %v160 = vadd.f32 %v157, %v159
  %v161 = vstv %s52
  %v162 = vmul.f32 %v152, %v161
  %v163 = vadd.f32 %v160, %v162
  %v164 = vstv %s57
  %v165 = vadd.f32 %v163, %v164
  %v166 = vstv %s53
  %v167 = vmul.f32 %v149, %v166
  %v168 = vstv %s54
  %v169 = vmul.f32 %v150, %v168
  %v170 = vadd.f32 %v167, %v169
  %v171 = vstv %s55
  %v172 = vmul.f32 %v151, %v171
  %v173 = vadd.f32 %v170, %v172
  %v174 = vstv %s56
  %v175 = vmul.f32 %v152, %v174
  %v176 = vadd.f32 %v173, %v175
  %v177 = vstv %s58
  %v178 = vadd.f32 %v176, %v177
  %v179 = vmul.f32 %v165, 0.5
  %v180 = vtanh.pop %v179
  %v181 = vmul.f32 %v180, 0.5
  %v182 = vadd.f32 %v181, 0.5
  %183 = vst [vmem:[%s2] sm:$0xff] %v182
  %v184 = vmul.f32 %v178, 0.5
  %v185 = vtanh.pop %v184
  %v186 = vmul.f32 %v185, 0.5
  %v187 = vadd.f32 %v186, 0.5
  %188 = vst [vmem:[%s2 + $0x8] sm:$0xff] %v187
  // Predicated region
  $region6: #{autoencoder_forward.1} parent=0 // pred_check
    _
  $region7: #{autoencoder_forward.1} parent=0 // pred_check_branch
    %190 = sbr.rel (0) target = $region9
  $region8: #{autoencoder_forward.1} parent=0 // pred_region
    _
  $region9: #{autoencoder_forward.1} parent=0 // pred_fallthru
    _
  // Predicated region
  $region10: #{autoencoder_forward.1} parent=0 // pred_check
    _
  $region11: #{autoencoder_forward.1} parent=0 // pred_check_branch
    %192 = sbr.rel (0) target = $region13
  $region12: #{autoencoder_forward.1} parent=0 // pred_region
    _
  $region13: #{autoencoder_forward.1} parent=0 // pred_fallthru
    _

</llo_original>
